<compile_context>
chip_gen: v5e
topology: v5e:2x2
jax: 0.10.0
libtpu: 0.0.40
codegen_flags: <defaults>
</compile_context>

<pallas_src>
import jax
import jax.numpy as jnp
from jax.experimental import pallas as pl
from jax.experimental.pallas import tpu as pltpu  # noqa: F401  (TPU backend)


def _noop_identity_kernel(x_ref, o_ref):
    # Output aliases input (input_output_aliases={0: 0}) and both refs live in
    # pl.ANY memory space (left in HBM), so the result is already in place:
    # nothing to do. No loads, no stores, no DMA -> zero HBM traffic.
    del x_ref, o_ref


def print_layer(x: jax.Array) -> jax.Array:
    """Pallas equivalent of PrintLayer.forward: print shape, return x unchanged."""
    # Side effect of the module: print the (static) shape on the host.
    # TODO(synk): under jax.jit this fires once at trace time rather than on
    # every call; shapes are static so the printed value matches torch's.
    print(tuple(x.shape))

    if x.size == 0:
        return x

    return pl.pallas_call(
        _noop_identity_kernel,
        out_shape=jax.ShapeDtypeStruct(x.shape, x.dtype),
        # memory_space=pl.ANY: the array stays wherever XLA put it (HBM);
        # Pallas generates no HBM<->VMEM DMA and imposes no (8,128) tiling
        # constraints, so any shape/dtype passes through untouched.
        in_specs=[pl.BlockSpec(memory_space=pl.ANY)],
        out_specs=pl.BlockSpec(memory_space=pl.ANY),
        # Output buffer IS the input buffer: identity with zero data movement
        # when the input is donatable (jit); one defensive copy otherwise.
        input_output_aliases={0: 0},
        # Advisory to XLA's scheduler: this call does no work.
        cost_estimate=pl.CostEstimate(
            flops=0, transcendentals=0, bytes_accessed=0),
    )(x)


if __name__ == "__main__":
    key = jax.random.PRNGKey(0)
    # Small NCHW input consistent with a LeNet-style intermediate activation.
    x = jax.random.normal(key, (2, 4, 16, 16), dtype=jnp.float32)

    y = print_layer(x)
    y = jax.block_until_ready(y)

    assert y.shape == x.shape and y.dtype == x.dtype
    assert bool(jnp.all(y == x))
    print("KERNEL_OK")
</pallas_src>

<mosaic_0001>
module attributes {stable_mosaic.version = 11 : i64} {
  func.func @_noop_identity_kernel(%arg0: memref<2x4x16x16xf32, #tpu.memory_space<any>>, %arg1: memref<2x4x16x16xf32, #tpu.memory_space<any>>) attributes {dimension_semantics = [], scalar_prefetch = 0 : i64, scratch_operands = 0 : i64, tpu.core_type = #tpu.core_type<tc>} {
    return
  }
}

</mosaic_0001>

<llo_original>
// kernel: tpu_custom_call.1
$region0: #{tpu_custom_call.1}
  #allocation0 [shape = 'u32[]', space=smem, size = 0x4, offset = 0x4, fixed_abs, tag = 'smem constant byte address 0x4 - core index']
  #allocation1 [shape = 'u32[72,128]{1,0:T(1,128)}', space=vmem, size = 0x9000, scoped, tag = 'internal scratch']
  %s0 = inlined_call_operand.hbm [shape: f32[2,4,16,16], index: 0, kind: input, shape index: {}, may-alias: {0,1}]
  %s1 = inlined_call_operand.hbm [shape: f32[2,4,16,16], index: 1, kind: output, shape index: {}, may-alias: {0,1}]
  %s2 = sld [smem:[#allocation0]]
  $region2: #{tpu_custom_call.1} parent=0
    _
  %s4 = ssub.s32 1, %s2
  %s5 = scalar_select 0, %s4, %s2

</llo_original>
